<compile_context>
chip_gen: v5e
topology: v5e:2x2
jax: 0.10.0
libtpu: 0.0.40
codegen_flags: <defaults>
</compile_context>

<pallas_src>
import jax
import jax.numpy as jnp
from jax.experimental import pallas as pl
from jax.experimental.pallas import tpu as pltpu


def _round_up(x, m):
    return ((x + m - 1) // m) * m


def _default_act_dtype():
    """bf16 elementwise on chips with a bf16 VPU (v6e/v7x+), f32 otherwise."""
    try:
        kind = jax.devices()[0].device_kind.lower()
    except Exception:  # pragma: no cover - no device info available
        return jnp.float32
    if any(old in kind for old in ("v2", "v3", "v4", "v5")):
        return jnp.float32
    return jnp.bfloat16


def _make_actor_kernel(act_dtype):
    def kernel(x_ref, w1_ref, b1_ref, w2_ref, b2_ref, w3_ref, b3_ref, o_ref):
        # fc1 + ReLU  (bf16 MXU matmul, f32 accumulation)
        h1 = jnp.dot(x_ref[...].astype(jnp.bfloat16), w1_ref[...],
                     preferred_element_type=jnp.float32)
        h1 = jnp.maximum(h1.astype(act_dtype) + b1_ref[...].astype(act_dtype),
                         0.0)
        # fc2 + ReLU
        h2 = jnp.dot(h1.astype(jnp.bfloat16), w2_ref[...],
                     preferred_element_type=jnp.float32)
        h2 = jnp.maximum(h2.astype(act_dtype) + b2_ref[...].astype(act_dtype),
                         0.0)
        # fc3 + tanh -- always f32 elementwise for the saturating nonlinearity.
        h3 = jnp.dot(h2.astype(jnp.bfloat16), w3_ref[...],
                     preferred_element_type=jnp.float32)
        o_ref[...] = jnp.tanh(h3 + b3_ref[...]).astype(o_ref.dtype)

    return kernel


def prepare_actor_params(params, weight_dtype=jnp.bfloat16):
    """Pad hidden/action dims to 128-lane granules, nb_states only to the
    16-row packing granule.  Weights cast to bf16; biases stay f32 (cast to
    the activation dtype inside the kernel, which is essentially free for a
    1-row bias).  Do this ONCE, not per step."""
    def pad2(a, rows, cols):
        return jnp.pad(a, ((0, rows - a.shape[0]), (0, cols - a.shape[1])))

    s, h1 = params["w1"].shape
    _, h2 = params["w2"].shape
    _, a = params["w3"].shape
    sp = _round_up(s, 16)          # sublane/packing granule only, not 128
    h1p = _round_up(h1, 128)
    h2p = _round_up(h2, 128)       # 300 -> 384 (minimal 3x128; do NOT go to 512)
    ap = _round_up(a, 128)
    return dict(
        w1=pad2(params["w1"], sp, h1p).astype(weight_dtype),
        b1=pad2(params["b1"], 1, h1p).astype(jnp.float32),
        w2=pad2(params["w2"], h1p, h2p).astype(weight_dtype),
        b2=pad2(params["b2"], 1, h2p).astype(jnp.float32),
        w3=pad2(params["w3"], h2p, ap).astype(weight_dtype),
        b3=pad2(params["b3"], 1, ap).astype(jnp.float32),
        nb_states=s,
        nb_actions=a,
    )


def actor_forward(x, prepped, *, batch_tile=512, act_dtype=None):
    """x: (B, nb_states) f32.  prepped: output of prepare_actor_params.
    Returns (B, nb_actions) f32."""
    if act_dtype is None:
        act_dtype = _default_act_dtype()

    w1, b1, w2, b2, w3, b3 = (prepped["w1"], prepped["b1"], prepped["w2"],
                              prepped["b2"], prepped["w3"], prepped["b3"])
    B, S = x.shape
    Sp = w1.shape[0]
    Ap = w3.shape[1]
    nb_actions = prepped["nb_actions"]

    # Row granule: 16 when bf16 activations are used (bf16 vregs pack 16
    # sublanes), otherwise 8.  Small batches are padded up to one tile.
    row_g = 16 if act_dtype == jnp.bfloat16 else 8
    bt = min(batch_tile, _round_up(B, row_g))
    if B >= 16:
        # Guarantee >= 2 grid steps so v7x's two TensorCores both get work
        # (harmless extra grid step on single-TC v5e/v6e).
        bt = min(bt, _round_up(pl.cdiv(_round_up(B, row_g), 2), row_g))
    Bp = _round_up(B, bt)

    xp = jnp.pad(x.astype(jnp.float32), ((0, Bp - B), (0, Sp - S)))
    grid = (Bp // bt,)

    def resident(shape):
        # Constant index_map -> stays resident in VMEM across batch tiles.
        return pl.BlockSpec(shape, lambda i: (0, 0))

    out_p = pl.pallas_call(
        _make_actor_kernel(act_dtype),
        out_shape=jax.ShapeDtypeStruct((Bp, Ap), jnp.bfloat16),
        grid=grid,
        in_specs=[
            pl.BlockSpec((bt, Sp), lambda i: (i, 0)),       # x: tiled over batch
            resident(w1.shape), resident(b1.shape),
            resident(w2.shape), resident(b2.shape),
            resident(w3.shape), resident(b3.shape),
        ],
        out_specs=pl.BlockSpec((bt, Ap), lambda i: (i, 0)),  # lane-dense output
        compiler_params=pltpu.CompilerParams(
            dimension_semantics=("parallel",),  # v7x: shard batch over both TCs
        ),
    )(xp, w1, b1, w2, b2, w3, b3)

    # Strip batch/action padding and restore f32 action values.
    return out_p[:B, :nb_actions].astype(jnp.float32)


def init_actor_params(key, nb_states, nb_actions, hidden1=400, hidden2=300,
                      init_w=0.003):
    """Deterministic init mirroring the PyTorch module's init_weights().

    fanin_init is called on weight of shape (out, in) with default
    fanin=size[0]=out_features (a known quirk of the original DDPG code);
    reproduced here.  Biases use nn.Linear's default U(-1/sqrt(in), 1/sqrt(in)).
    Weights stored transposed: (in_features, out_features), f32.
    """
    ks = jax.random.split(key, 6)

    def u(k, shape, bound):
        return jax.random.uniform(k, shape, jnp.float32, -bound, bound)

    w1 = u(ks[0], (nb_states, hidden1), 1.0 / jnp.sqrt(hidden1))
    b1 = u(ks[1], (1, hidden1), 1.0 / jnp.sqrt(nb_states))
    w2 = u(ks[2], (hidden1, hidden2), 1.0 / jnp.sqrt(hidden2))
    b2 = u(ks[3], (1, hidden2), 1.0 / jnp.sqrt(hidden1))
    w3 = u(ks[4], (hidden2, nb_actions), init_w)
    b3 = u(ks[5], (1, nb_actions), 1.0 / jnp.sqrt(hidden2))

    return dict(w1=w1, b1=b1, w2=w2, b2=b2, w3=w3, b3=b3)


def actor_reference(x, p):
    # Pure-f32 reference with the original (unpadded) PyTorch semantics.
    h1 = jnp.maximum(x @ p["w1"] + p["b1"], 0.0)
    h2 = jnp.maximum(h1 @ p["w2"] + p["b2"], 0.0)
    return jnp.tanh(h2 @ p["w3"] + p["b3"])


if __name__ == "__main__":
    key = jax.random.PRNGKey(0)
    kx, kp = jax.random.split(key)

    batch, nb_states, nb_actions = 2, 16, 4
    hidden1, hidden2 = 400, 300

    x = jax.random.normal(kx, (batch, nb_states), jnp.float32)
    params = init_actor_params(kp, nb_states, nb_actions, hidden1, hidden2)
    prepped = prepare_actor_params(params)

    out = jax.block_until_ready(actor_forward(x, prepped))
    ref = jax.block_until_ready(actor_reference(x, params))

    assert out.shape == (batch, nb_actions), out.shape
    # bf16 weights / dot inputs / (on v6e+) bf16 intermediates and bf16 output
    # store => relaxed tolerance vs the pure-f32 reference.  Zero padding
    # itself is exact.
    assert jnp.allclose(out, ref, atol=1e-3, rtol=3e-2), (
        "mismatch vs reference", float(jnp.max(jnp.abs(out - ref))))
    print("KERNEL_OK")
</pallas_src>

<mosaic_0001>
module attributes {stable_mosaic.version = 11 : i64} {
  func.func @kernel(%arg0: i32, %arg1: memref<16x16xf32, #tpu.memory_space<vmem>>, %arg2: memref<16x512xbf16, #tpu.memory_space<vmem>>, %arg3: memref<1x512xf32, #tpu.memory_space<vmem>>, %arg4: memref<512x384xbf16, #tpu.memory_space<vmem>>, %arg5: memref<1x384xf32, #tpu.memory_space<vmem>>, %arg6: memref<384x128xbf16, #tpu.memory_space<vmem>>, %arg7: memref<1x128xf32, #tpu.memory_space<vmem>>, %arg8: memref<16x128xbf16, #tpu.memory_space<vmem>>) attributes {dimension_semantics = [#tpu.dimension_semantics<parallel>], iteration_bounds = array<i64: 1>, scalar_prefetch = 0 : i64, scratch_operands = 0 : i64, tpu.core_type = #tpu.core_type<tc>, window_params = [{transform_indices = @transform_0, window_bounds = array<i64: 16, 16>}, {pipeline_mode = #tpu.pipeline_mode<synchronous>, transform_indices = @transform_1, window_bounds = array<i64: 16, 512>}, {pipeline_mode = #tpu.pipeline_mode<synchronous>, transform_indices = @transform_2, window_bounds = array<i64: 1, 512>}, {pipeline_mode = #tpu.pipeline_mode<synchronous>, transform_indices = @transform_3, window_bounds = array<i64: 512, 384>}, {pipeline_mode = #tpu.pipeline_mode<synchronous>, transform_indices = @transform_4, window_bounds = array<i64: 1, 384>}, {pipeline_mode = #tpu.pipeline_mode<synchronous>, transform_indices = @transform_5, window_bounds = array<i64: 384, 128>}, {pipeline_mode = #tpu.pipeline_mode<synchronous>, transform_indices = @transform_6, window_bounds = array<i64: 1, 128>}, {transform_indices = @transform_7, window_bounds = array<i64: 16, 128>}]} {
    %c0 = arith.constant 0 : index
    %c0_0 = arith.constant 0 : index
    %0 = vector.load %arg1[%c0, %c0_0] : memref<16x16xf32, #tpu.memory_space<vmem>>, vector<16x16xf32>
    %1 = arith.truncf %0 : vector<16x16xf32> to vector<16x16xbf16>
    %c0_1 = arith.constant 0 : index
    %c0_2 = arith.constant 0 : index
    %2 = vector.load %arg2[%c0_1, %c0_2] : memref<16x512xbf16, #tpu.memory_space<vmem>>, vector<16x512xbf16>
    %cst = arith.constant dense<0.000000e+00> : vector<16x512xf32>
    %3 = tpu.matmul %1, %2, %cst {dimension_numbers = #tpu.dot_dimension_numbers<[1], [0], [0], [1], [0, 0, 1, 1], [], []>} : vector<16x16xbf16>, vector<16x512xbf16>, vector<16x512xf32> -> vector<16x512xf32>
    %4 = arith.truncf %3 : vector<16x512xf32> to vector<16x512xbf16>
    %c0_3 = arith.constant 0 : index
    %c0_4 = arith.constant 0 : index
    %5 = vector.load %arg3[%c0_3, %c0_4] : memref<1x512xf32, #tpu.memory_space<vmem>>, vector<1x512xf32>
    %6 = arith.truncf %5 : vector<1x512xf32> to vector<1x512xbf16>
    %7 = vector.broadcast %6 : vector<1x512xbf16> to vector<16x512xbf16>
    %8 = arith.addf %4, %7 : vector<16x512xbf16>
    %cst_5 = arith.constant 0.000000e+00 : bf16
    %9 = vector.broadcast %cst_5 : bf16 to vector<16x512xbf16>
    %10 = arith.maximumf %8, %9 : vector<16x512xbf16>
    %c0_6 = arith.constant 0 : index
    %c0_7 = arith.constant 0 : index
    %11 = vector.load %arg4[%c0_6, %c0_7] : memref<512x384xbf16, #tpu.memory_space<vmem>>, vector<512x384xbf16>
    %cst_8 = arith.constant dense<0.000000e+00> : vector<16x384xf32>
    %12 = tpu.matmul %10, %11, %cst_8 {dimension_numbers = #tpu.dot_dimension_numbers<[1], [0], [0], [1], [0, 0, 1, 1], [], []>} : vector<16x512xbf16>, vector<512x384xbf16>, vector<16x384xf32> -> vector<16x384xf32>
    %13 = arith.truncf %12 : vector<16x384xf32> to vector<16x384xbf16>
    %c0_9 = arith.constant 0 : index
    %c0_10 = arith.constant 0 : index
    %14 = vector.load %arg5[%c0_9, %c0_10] : memref<1x384xf32, #tpu.memory_space<vmem>>, vector<1x384xf32>
    %15 = arith.truncf %14 : vector<1x384xf32> to vector<1x384xbf16>
    %16 = vector.broadcast %15 : vector<1x384xbf16> to vector<16x384xbf16>
    %17 = arith.addf %13, %16 : vector<16x384xbf16>
    %cst_11 = arith.constant 0.000000e+00 : bf16
    %18 = vector.broadcast %cst_11 : bf16 to vector<16x384xbf16>
    %19 = arith.maximumf %17, %18 : vector<16x384xbf16>
    %c0_12 = arith.constant 0 : index
    %c0_13 = arith.constant 0 : index
    %20 = vector.load %arg6[%c0_12, %c0_13] : memref<384x128xbf16, #tpu.memory_space<vmem>>, vector<384x128xbf16>
    %cst_14 = arith.constant dense<0.000000e+00> : vector<16x128xf32>
    %21 = tpu.matmul %19, %20, %cst_14 {dimension_numbers = #tpu.dot_dimension_numbers<[1], [0], [0], [1], [0, 0, 1, 1], [], []>} : vector<16x384xbf16>, vector<384x128xbf16>, vector<16x128xf32> -> vector<16x128xf32>
    %c0_15 = arith.constant 0 : index
    %c0_16 = arith.constant 0 : index
    %22 = vector.load %arg7[%c0_15, %c0_16] : memref<1x128xf32, #tpu.memory_space<vmem>>, vector<1x128xf32>
    %23 = vector.broadcast %22 : vector<1x128xf32> to vector<16x128xf32>
    %24 = arith.addf %21, %23 : vector<16x128xf32>
    %25 = math.tanh %24 : vector<16x128xf32>
    %26 = arith.truncf %25 : vector<16x128xf32> to vector<16x128xbf16>
    %c0_17 = arith.constant 0 : index
    %c0_18 = arith.constant 0 : index
    %27 = vector.load %arg8[%c0_17, %c0_18] : memref<16x128xbf16, #tpu.memory_space<vmem>>, vector<16x128xbf16>
    tpu.vector_store %arg8[%c0_17, %c0_18], %26 {strides = array<i32>} : memref<16x128xbf16, #tpu.memory_space<vmem>>, vector<16x128xbf16>,
    return
  }
  func.func @transform_0(%arg0: i32) -> (i32, i32) {
    %c0_i32 = arith.constant 0 : i32
    %c0_i32_0 = arith.constant 0 : i32
    return %arg0, %c0_i32 : i32, i32
  }
  func.func @transform_1(%arg0: i32) -> (i32, i32) {
    %c0_i32 = arith.constant 0 : i32
    %c0_i32_0 = arith.constant 0 : i32
    %c0_i32_1 = arith.constant 0 : i32
    return %c0_i32, %c0_i32_0 : i32, i32
  }
  func.func @transform_2(%arg0: i32) -> (i32, i32) {
    %c0_i32 = arith.constant 0 : i32
    %c0_i32_0 = arith.constant 0 : i32
    %c0_i32_1 = arith.constant 0 : i32
    return %c0_i32, %c0_i32_0 : i32, i32
  }
  func.func @transform_3(%arg0: i32) -> (i32, i32) {
    %c0_i32 = arith.constant 0 : i32
    %c0_i32_0 = arith.constant 0 : i32
    %c0_i32_1 = arith.constant 0 : i32
    return %c0_i32, %c0_i32_0 : i32, i32
  }
  func.func @transform_4(%arg0: i32) -> (i32, i32) {
    %c0_i32 = arith.constant 0 : i32
    %c0_i32_0 = arith.constant 0 : i32
    %c0_i32_1 = arith.constant 0 : i32
    return %c0_i32, %c0_i32_0 : i32, i32
  }
  func.func @transform_5(%arg0: i32) -> (i32, i32) {
    %c0_i32 = arith.constant 0 : i32
    %c0_i32_0 = arith.constant 0 : i32
    %c0_i32_1 = arith.constant 0 : i32
    return %c0_i32, %c0_i32_0 : i32, i32
  }
  func.func @transform_6(%arg0: i32) -> (i32, i32) {
    %c0_i32 = arith.constant 0 : i32
    %c0_i32_0 = arith.constant 0 : i32
    %c0_i32_1 = arith.constant 0 : i32
    return %c0_i32, %c0_i32_0 : i32, i32
  }
  func.func @transform_7(%arg0: i32) -> (i32, i32) {
    %c0_i32 = arith.constant 0 : i32
    %c0_i32_0 = arith.constant 0 : i32
    return %arg0, %c0_i32 : i32, i32
  }
}

</mosaic_0001>

<llo_original>
// kernel: tpu_custom_call.1
$region0: #{tpu_custom_call.1}
  #allocation0 [shape = 'u32[]', space=smem, size = 0x4, offset = 0x4, fixed_abs, tag = 'smem constant byte address 0x4 - core index']
  #allocation1 [shape = 'u32[72,128]{1,0:T(1,128)}', space=vmem, size = 0x9000, scoped, tag = 'internal scratch']
  %s0 = inlined_call_operand.hbm [shape: f32[16,16], index: 0, kind: input, shape index: {}]
  %s1 = inlined_call_operand.hbm [shape: bf16[16,512], index: 1, kind: input, shape index: {}]
  %s2 = inlined_call_operand.hbm [shape: f32[1,512], index: 2, kind: input, shape index: {}]
  %s3 = inlined_call_operand.hbm [shape: bf16[512,384], index: 3, kind: input, shape index: {}]
  %s4 = inlined_call_operand.vmem [shape: f32[1,384], index: 4, kind: input, shape index: {}]
  %s5 = inlined_call_operand.hbm [shape: bf16[384,128], index: 5, kind: input, shape index: {}]
  %s6 = inlined_call_operand.vmem [shape: f32[1,128], index: 6, kind: input, shape index: {}]
  %s7 = inlined_call_operand.hbm [shape: bf16[16,128], index: 7, kind: output, shape index: {}]
  %s8 = sld [smem:[#allocation0]]
  $region58: #{tpu_custom_call.1} parent=0
    _
  %s10 = ssub.s32 1, %s8
  %s11 = scalar_select 0, %s10, %s8
  $region1: #{tpu_custom_call.1} parent=0
    #allocation2 [shape = 'u8[8192]{0}', space=vmem, size = 0x2000, scoped, tag = 'input window, operand 0, single buffered']
    #allocation3 [shape = 's32[1]{0}', space=sflag, size = 0x4, scoped, tag = 'scoped memory for tpu_custom_call.1']
    #allocation4 [shape = 's32[1]{0}', space=sflag, size = 0x4, scoped, tag = 'scoped memory for tpu_custom_call.1']
    #allocation5 [shape = 'u8[16384]{0}', space=vmem, size = 0x4000, scoped, tag = 'input window, operand 1, single buffered']
    #allocation6 [shape = 's32[1]{0}', space=sflag, size = 0x4, scoped, tag = 'scoped memory for tpu_custom_call.1']
    #allocation7 [shape = 'u8[2048]{0}', space=vmem, size = 0x800, scoped, tag = 'input window, operand 2, single buffered']
    #allocation8 [shape = 'u8[393216]{0}', space=vmem, size = 0x60000, scoped, tag = 'input window, operand 3, single buffered']
    #allocation9 [shape = 's32[1]{0}', space=sflag, size = 0x4, scoped, tag = 'scoped memory for tpu_custom_call.1']
    #allocation10 [shape = 'u8[98304]{0}', space=vmem, size = 0x18000, scoped, tag = 'input window, operand 5, single buffered']
    #allocation11 [shape = 'u8[4096]{0}', space=vmem, size = 0x1000, scoped, tag = 'output window, operand 0, single buffered']
    %12 = vsyncpa [#allocation3], 0
    %13 = vsyncpa [#allocation6], 0
    %14 = vsyncpa [#allocation9], 0
    %15 = vsyncpa [#allocation4], 0
    // Predicated region
    $region2: #{tpu_custom_call.1} parent=1 // pred_check
      _
    $region3: #{tpu_custom_call.1} parent=1 // pred_check_branch
      %17 = sbr.rel (0) target = $region5
    $region4: #{tpu_custom_call.1} parent=1 // pred_region
      %19 = vsyncadd [#allocation3], 0
      %s20 = sshll.u32 %s0, 4
      %s21 = int_to_ptr.hbm [resolvable:$true] %s20
      %s22 = sshll.u32 [#allocation2], 4
      %s23 = int_to_ptr.vmem [resolvable:$true] %s22
      %28 = dma.hbm_to_vmem [thread:$0]  %s21, 256, %s23, [#allocation3], 128, 128, 8
    $region5: #{tpu_custom_call.1} parent=1 // pred_fallthru
      _
    // Predicated region
    $region6: #{tpu_custom_call.1} parent=1 // pred_check
      _
    $region7: #{tpu_custom_call.1} parent=1 // pred_check_branch
      %30 = sbr.rel (0) target = $region9
    $region8: #{tpu_custom_call.1} parent=1 // pred_region
      %32 = vsyncadd [#allocation6], 0
      %s33 = sshll.u32 %s1, 4
      %s34 = int_to_ptr.hbm [resolvable:$true] %s33
      %s35 = sshll.u32 [#allocation5], 4
      %s36 = int_to_ptr.vmem [resolvable:$true] %s35
      %41 = dma.hbm_to_vmem [thread:$0]  %s34, 512, %s36, [#allocation6], 256, 256, 16
    $region9: #{tpu_custom_call.1} parent=1 // pred_fallthru
      _
    // Predicated region
    $region10: #{tpu_custom_call.1} parent=1 // pred_check
      _
    $region11: #{tpu_custom_call.1} parent=1 // pred_check_branch
      %43 = sbr.rel (0) target = $region13
    $region12: #{tpu_custom_call.1} parent=1 // pred_region
      %45 = vsyncadd [#allocation6], 0
      %s47 = sshll.u32 %s2, 4
      %s48 = int_to_ptr.hbm [resolvable:$true] %s47
      %s49 = sshll.u32 [#allocation7], 4
      %s50 = int_to_ptr.vmem [resolvable:$true] %s49
      %52 = dma.hbm_to_vmem [thread:$0]  %s48, 64, %s50, [#allocation6]
    $region13: #{tpu_custom_call.1} parent=1 // pred_fallthru
      _
    // Predicated region
    $region14: #{tpu_custom_call.1} parent=1 // pred_check
      _
    $region15: #{tpu_custom_call.1} parent=1 // pred_check_branch
      %54 = sbr.rel (0) target = $region17
    $region16: #{tpu_custom_call.1} parent=1 // pred_region
      %56 = vsyncadd [#allocation9], 0
      %s57 = sshll.u32 %s3, 4
      %s58 = int_to_ptr.hbm [resolvable:$true] %s57
      %s59 = sshll.u32 [#allocation8], 4
      %s60 = int_to_ptr.vmem [resolvable:$true] %s59
      %65 = dma.hbm_to_vmem [thread:$0]  %s58, 12288, %s60, [#allocation9], 192, 192, 12
    $region17: #{tpu_custom_call.1} parent=1 // pred_fallthru
      _
    // Predicated region
    $region18: #{tpu_custom_call.1} parent=1 // pred_check
      _
    $region19: #{tpu_custom_call.1} parent=1 // pred_check_branch
      %67 = sbr.rel (0) target = $region21
    $region20: #{tpu_custom_call.1} parent=1 // pred_region
      _
    $region21: #{tpu_custom_call.1} parent=1 // pred_fallthru
      _
    // Predicated region
    $region22: #{tpu_custom_call.1} parent=1 // pred_check
      _
    $region23: #{tpu_custom_call.1} parent=1 // pred_check_branch
      %69 = sbr.rel (0) target = $region25
    $region24: #{tpu_custom_call.1} parent=1 // pred_region
      %71 = vsyncadd [#allocation9], 0
      %s72 = sshll.u32 %s5, 4
      %s73 = int_to_ptr.hbm [resolvable:$true] %s72
      %s74 = sshll.u32 [#allocation10], 4
      %s75 = int_to_ptr.vmem [resolvable:$true] %s74
      %80 = dma.hbm_to_vmem [thread:$0]  %s73, 3072, %s75, [#allocation9], 64, 64, 4
    $region25: #{tpu_custom_call.1} parent=1 // pred_fallthru
      _
    // Predicated region
    $region26: #{tpu_custom_call.1} parent=1 // pred_check
      _
    $region27: #{tpu_custom_call.1} parent=1 // pred_check_branch
      %82 = sbr.rel (0) target = $region29
    $region28: #{tpu_custom_call.1} parent=1 // pred_region
      _
    $region29: #{tpu_custom_call.1} parent=1 // pred_fallthru
      _
    // Predicated region
    $region30: #{tpu_custom_call.1} parent=1 // pred_check
      _
    $region31: #{tpu_custom_call.1} parent=1 // pred_check_branch
      %84 = sbr.rel (0) target = $region33
    $region32: #{tpu_custom_call.1} parent=1 // pred_region
      %86 = dma.done [#allocation3], 256
    $region33: #{tpu_custom_call.1} parent=1 // pred_fallthru
      _
    // Predicated region
    $region34: #{tpu_custom_call.1} parent=1 // pred_check
      _
    $region35: #{tpu_custom_call.1} parent=1 // pred_check_branch
      %88 = sbr.rel (0) target = $region37
    $region36: #{tpu_custom_call.1} parent=1 // pred_region
      %90 = dma.done [#allocation6], 512
    $region37: #{tpu_custom_call.1} parent=1 // pred_fallthru
      _
    // Predicated region
    $region38: #{tpu_custom_call.1} parent=1 // pred_check
      _
    $region39: #{tpu_custom_call.1} parent=1 // pred_check_branch
      %92 = sbr.rel (0) target = $region41
    $region40: #{tpu_custom_call.1} parent=1 // pred_region
      %94 = dma.done [#allocation6], 64
    $region41: #{tpu_custom_call.1} parent=1 // pred_fallthru
      _
    // Predicated region
    $region42: #{tpu_custom_call.1} parent=1 // pred_check
      _
    $region43: #{tpu_custom_call.1} parent=1 // pred_check_branch
      %96 = sbr.rel (0) target = $region45
    $region44: #{tpu_custom_call.1} parent=1 // pred_region
      %98 = dma.done [#allocation9], 12288
    $region45: #{tpu_custom_call.1} parent=1 // pred_fallthru
      _
    // Predicated region
    $region46: #{tpu_custom_call.1} parent=1 // pred_check
      _
    $region47: #{tpu_custom_call.1} parent=1 // pred_check_branch
      %100 = sbr.rel (0) target = $region49
    $region48: #{tpu_custom_call.1} parent=1 // pred_region
      %102 = dma.done [#allocation9], 3072
    $region49: #{tpu_custom_call.1} parent=1 // pred_fallthru
      _
    %v104 = vld [vmem:[#allocation2] sm:$0xff]
    %v105 = vld [vmem:[#allocation2 + $0x8] sm:$0xff]
    %v106 = vpack.c.bf16 %v105, %v104
    %v107 = vld [vmem:[#allocation5] sm:$0xff]
    %v108 = vld [vmem:[#allocation5 + $0x8] sm:$0xff]
    %v109 = vld [vmem:[#allocation5 + $0x10] sm:$0xff]
    %v110 = vld [vmem:[#allocation5 + $0x18] sm:$0xff]
    %v115 = vunpack.c.l.b16 %v107
    %v116 = vunpack.c.h.b16 %v107
    %v117 = vunpack.c.l.b16 %v108
    %v118 = vunpack.c.h.b16 %v108
    %v119 = vunpack.c.l.b16 %v109
    %v120 = vunpack.c.h.b16 %v109
    %v121 = vunpack.c.l.b16 %v110
    %v122 = vunpack.c.h.b16 %v110
    %v123 = vpack.c.b16 %v119, %v115
    %v124 = vpack.c.b16 %v120, %v116
    %v125 = vpack.c.b16 %v121, %v117
    %v126 = vpack.c.b16 %v122, %v118
    %vm131 = vcmask 130048
    %v133 = vsel %vm131, %v106, 0
    %135 = vmatpush.bf16.msra.mxu0 0
    %136 = vmatpush.bf16.msra.mxu0 0
    %137 = vmatpush.bf16.msra.mxu0 0
    %138 = vmatpush.bf16.msra.mxu0 0
    %139 = vmatpush.bf16.msra.mxu0 0
    %140 = vmatpush.bf16.msra.mxu0 0
    %141 = vmatpush.bf16.msra.mxu0 0
    %142 = vmatpush.bf16.msra.mxu0 %v123
    %143 = vmatmul.bf16.gmra.mxu0 %v133
    %v144 = vpop.f32.mrf.mxu0
    %v145 = vadd.f32 0.0, %v144
    %v146 = vpop.f32.mrf.mxu0
    %v147 = vadd.f32 0.0, %v146
    %148 = vdwg.mxu0
    %149 = vmatpush.bf16.msra.mxu0 0
    %150 = vmatpush.bf16.msra.mxu0 0
    %151 = vmatpush.bf16.msra.mxu0 0
    %152 = vmatpush.bf16.msra.mxu0 0
    %153 = vmatpush.bf16.msra.mxu0 0
    %154 = vmatpush.bf16.msra.mxu0 0
    %155 = vmatpush.bf16.msra.mxu0 0
    %156 = vmatpush.bf16.msra.mxu0 %v124
    %157 = vmatmul.bf16.gmra.mxu0 %v133
    %v158 = vpop.f32.mrf.mxu0
    %v159 = vadd.f32 0.0, %v158
    %v160 = vpop.f32.mrf.mxu0
    %v161 = vadd.f32 0.0, %v160
    %162 = vdwg.mxu0
    %163 = vmatpush.bf16.msra.mxu0 0
    %164 = vmatpush.bf16.msra.mxu0 0
    %165 = vmatpush.bf16.msra.mxu0 0
    %166 = vmatpush.bf16.msra.mxu0 0
    %167 = vmatpush.bf16.msra.mxu0 0
    %168 = vmatpush.bf16.msra.mxu0 0
    %169 = vmatpush.bf16.msra.mxu0 0
    %170 = vmatpush.bf16.msra.mxu0 %v125
    %171 = vmatmul.bf16.gmra.mxu0 %v133
    %v172 = vpop.f32.mrf.mxu0
    %v173 = vadd.f32 0.0, %v172
    %v174 = vpop.f32.mrf.mxu0
    %v175 = vadd.f32 0.0, %v174
    %176 = vdwg.mxu0
    %177 = vmatpush.bf16.msra.mxu0 0
    %178 = vmatpush.bf16.msra.mxu0 0
    %179 = vmatpush.bf16.msra.mxu0 0
    %180 = vmatpush.bf16.msra.mxu0 0
    %181 = vmatpush.bf16.msra.mxu0 0
    %182 = vmatpush.bf16.msra.mxu0 0
    %183 = vmatpush.bf16.msra.mxu0 0
    %184 = vmatpush.bf16.msra.mxu0 %v126
    %185 = vmatmul.bf16.gmra.mxu0 %v133
    %v186 = vpop.f32.mrf.mxu0
    %v187 = vadd.f32 0.0, %v186
    %v188 = vpop.f32.mrf.mxu0
    %v189 = vadd.f32 0.0, %v188
    %190 = vdwg.mxu0
    %v191 = vpack.c.bf16 %v159, %v145
    %v192 = vpack.c.bf16 %v187, %v173
    %v193 = vpack.c.bf16 %v161, %v147
    %v194 = vpack.c.bf16 %v189, %v175
    %v195 = vld [vmem:[#allocation7] sm:$0xf]
    %v197 = vperm.slane %v195, 0
    %v198 = vperm.slane %v195, 1
    %v199 = vperm.slane %v195, 2
    %v200 = vperm.slane %v195, 3
    %v205 = vpack.c.bf16 %v198, %v197
    %v206 = vpack.c.bf16 %v200, %v199
    %v209 = vunpack.c.l.b16 %v205
    %v210 = vunpack.c.h.b16 %v205
    %v211 = vunpack.c.l.b16 %v206
    %v212 = vunpack.c.h.b16 %v206
    %v213 = vpack.c.b16 %v209, %v209
    %v214 = vpack.c.b16 %v210, %v210
    %v215 = vpack.c.b16 %v211, %v211
    %v216 = vpack.c.b16 %v212, %v212
    %v218 = vpack.i.b16 %v213, %v213
    %v220 = vperm.slane %v218, 0
    %v222 = vpack.i.b16 %v214, %v214
    %v224 = vperm.slane %v222, 0
    %v226 = vpack.i.b16 %v215, %v215
    %v228 = vperm.slane %v226, 0
    %v230 = vpack.i.b16 %v216, %v216
    %v232 = vperm.slane %v230, 0
    %v233 = vunpack.c.l.bf16 %v191
    %v234 = vunpack.c.h.bf16 %v191
    %v235 = vunpack.c.l.bf16 %v192
    %v236 = vunpack.c.h.bf16 %v192
    %v237 = vunpack.c.l.bf16 %v193
    %v238 = vunpack.c.h.bf16 %v193
    %v239 = vunpack.c.l.bf16 %v194
    %v240 = vunpack.c.h.bf16 %v194
    %v241 = vunpack.c.l.bf16 %v220
    %v242 = vunpack.c.l.bf16 %v224
    %v243 = vunpack.c.l.bf16 %v228
    %v244 = vunpack.c.l.bf16 %v232
    %v245 = vadd.f32 %v233, %v241
    %v246 = vadd.f32 %v234, %v242
    %v247 = vadd.f32 %v235, %v243
    %v248 = vadd.f32 %v236, %v244
    %v249 = vadd.f32 %v237, %v241
    %v250 = vadd.f32 %v238, %v242
    %v251 = vadd.f32 %v239, %v243
    %v252 = vadd.f32 %v240, %v244
    %v253 = vpack.c.bf16 %v246, %v245
    %v254 = vpack.c.bf16 %v248, %v247
    %v255 = vpack.c.bf16 %v250, %v249
    %v256 = vpack.c.bf16 %v252, %v251
    %v257 = vunpack.c.l.bf16 %v253
    %v258 = vunpack.c.h.bf16 %v253
    %v259 = vunpack.c.l.bf16 %v254
    %v260 = vunpack.c.h.bf16 %v254
    %v261 = vunpack.c.l.bf16 %v255
    %v262 = vunpack.c.h.bf16 %v255
    %v263 = vunpack.c.l.bf16 %v256
    %v264 = vunpack.c.h.bf16 %v256
    %v265 = vmax.f32 %v257, 0.0
    %v266 = vmax.f32 %v258, 0.0
    %v267 = vmax.f32 %v259, 0.0
    %v268 = vmax.f32 %v260, 0.0
    %v269 = vmax.f32 %v261, 0.0
    %v270 = vmax.f32 %v262, 0.0
    %v271 = vmax.f32 %v263, 0.0
    %v272 = vmax.f32 %v264, 0.0
    %v273 = vpack.c.bf16 %v269, %v265
    %v274 = vpack.c.bf16 %v270, %v266
    %v275 = vpack.c.bf16 %v271, %v267
    %v276 = vpack.c.bf16 %v272, %v268
    %v277 = vld [vmem:[#allocation8] sm:$0xff]
    %v278 = vld [vmem:[#allocation8 + $0x8] sm:$0xf]
    %v279 = vld [vmem:[#allocation8 + $0xc] sm:$0xff]
    %v280 = vld [vmem:[#allocation8 + $0x14] sm:$0xf]
    %v281 = vld [vmem:[#allocation8 + $0x18] sm:$0xff]
    %v282 = vld [vmem:[#allocation8 + $0x20] sm:$0xf]
    %v283 = vld [vmem:[#allocation8 + $0x24] sm:$0xff]
    %v284 = vld [vmem:[#allocation8 + $0x2c] sm:$0xf]
    %v285 = vld [vmem:[#allocation8 + $0x30] sm:$0xff]
    %v286 = vld [vmem:[#allocation8 + $0x38] sm:$0xf]
    %v287 = vld [vmem:[#allocation8 + $0x3c] sm:$0xff]
    %v288 = vld [vmem:[#allocation8 + $0x44] sm:$0xf]
    %v289 = vld [vmem:[#allocation8 + $0x48] sm:$0xff]
    %v290 = vld [vmem:[#allocation8 + $0x50] sm:$0xf]
    %v291 = vld [vmem:[#allocation8 + $0x54] sm:$0xff]
    %v292 = vld [vmem:[#allocation8 + $0x5c] sm:$0xf]
    %v293 = vld [vmem:[#allocation8 + $0x60] sm:$0xff]
    %v294 = vld [vmem:[#allocation8 + $0x68] sm:$0xf]
    %v295 = vld [vmem:[#allocation8 + $0x6c] sm:$0xff]
    %v296 = vld [vmem:[#allocation8 + $0x74] sm:$0xf]
    %v297 = vld [vmem:[#allocation8 + $0x78] sm:$0xff]
    %v298 = vld [vmem:[#allocation8 + $0x80] sm:$0xf]
    %v299 = vld [vmem:[#allocation8 + $0x84] sm:$0xff]
    %v300 = vld [vmem:[#allocation8 + $0x8c] sm:$0xf]
    %v301 = vld [vmem:[#allocation8 + $0x90] sm:$0xff]
    %v302 = vld [vmem:[#allocation8 + $0x98] sm:$0xf]
    %v303 = vld [vmem:[#allocation8 + $0x9c] sm:$0xff]
    %v304 = vld [vmem:[#allocation8 + $0xa4] sm:$0xf]
    %v305 = vld [vmem:[#allocation8 + $0xa8] sm:$0xff]
    %v306 = vld [vmem:[#allocation8 + $0xb0] sm:$0xf]
    %v307 = vld [vmem:[#allocation8 + $0xb4] sm:$0xff]
    %v308 = vld [vmem:[#allocation8 + $0xbc] sm:$0xf]
    %v309 = vld [vmem:[#allocation8 + $0xc0] sm:$0xff]
    %v310 = vld [vmem:[#allocation8 + $0xc8] sm:$0xf]
    %v311 = vld [vmem:[#allocation8 + $0xcc] sm:$0xff]
    %v312 = vld [vmem:[#allocation8 + $0xd4] sm:$0xf]
    %v313 = vld [vmem:[#allocation8 + $0xd8] sm:$0xff]
    %v314 = vld [vmem:[#allocation8 + $0xe0] sm:$0xf]
    %v315 = vld [vmem:[#allocation8 + $0xe4] sm:$0xff]
    %v316 = vld [vmem:[#allocation8 + $0xec] sm:$0xf]
    %v317 = vld [vmem:[#allocation8 + $0xf0] sm:$0xff]
    %v318 = vld [vmem:[#allocation8 + $0xf8] sm:$0xf]
    %v319 = vld [vmem:[#allocation8 + $0xfc] sm:$0xff]
    %v320 = vld [vmem:[#allocation8 + $0x104] sm:$0xf]
    %v321 = vld [vmem:[#allocation8 + $0x108] sm:$0xff]
    %v322 = vld [vmem:[#allocation8 + $0x110] sm:$0xf]
    %v323 = vld [vmem:[#allocation8 + $0x114] sm:$0xff]
    %v324 = vld [vmem:[#allocation8 + $0x11c] sm:$0xf]
    %v325 = vld [vmem:[#allocation8 + $0x120] sm:$0xff]
    %v326 = vld [vmem:[#allocation8 + $0x128] sm:$0xf]
    %v327 = vld [vmem:[#allocation8 + $0x12c] sm:$0xff]
    %v328 = vld [vmem:[#allocation8 + $0x134] sm:$0xf]
    %v329 = vld [vmem:[#allocation8 + $0x138] sm:$0xff]
    %v330 = vld [vmem:[#allocation8 + $0x140] sm:$0xf]
    %v331 = vld [vmem:[#allocation8 + $0x144] sm:$0xff]
    %v332 = vld [vmem:[#allocation8 + $0x14c] sm:$0xf]
    %v333 = vld [vmem:[#allocation8 + $0x150] sm:$0xff]
    %v334 = vld [vmem:[#allocation8 + $0x158] sm:$0xf]
    %v335 = vld [vmem:[#allocation8 + $0x15c] sm:$0xff]
    %v336 = vld [vmem:[#allocation8 + $0x164] sm:$0xf]
    %v337 = vld [vmem:[#allocation8 + $0x168] sm:$0xff]
    %v338 = vld [vmem:[#allocation8 + $0x170] sm:$0xf]
    %v339 = vld [vmem:[#allocation8 + $0x174] sm:$0xff]
    %v340 = vld [vmem:[#allocation8 + $0x17c] sm:$0xf]
    %v341 = vld [vmem:[#allocation8 + $0x180] sm:$0xff]
    %v342 = vld [vmem:[#allocation8 + $0x188] sm:$0xf]
    %v343 = vld [vmem:[#allocation8 + $0x18c] sm:$0xff]
    %v344 = vld [vmem:[#allocation8 + $0x194] sm:$0xf]
    %v345 = vld [vmem:[#allocation8 + $0x198] sm:$0xff]
    %v346 = vld [vmem:[#allocation8 + $0x1a0] sm:$0xf]
    %v347 = vld [vmem:[#allocation8 + $0x1a4] sm:$0xff]
    %v348 = vld [vmem:[#allocation8 + $0x1ac] sm:$0xf]
    %v349 = vld [vmem:[#allocation8 + $0x1b0] sm:$0xff]
    %v350 = vld [vmem:[#allocation8 + $0x1b8] sm:$0xf]
    %v351 = vld [vmem:[#allocation8 + $0x1bc] sm:$0xff]
    %v352 = vld [vmem:[#allocation8 + $0x1c4] sm:$0xf]
    %v353 = vld [vmem:[#allocation8 + $0x1c8] sm:$0xff]
    %v354 = vld [vmem:[#allocation8 + $0x1d0] sm:$0xf]
    %v355 = vld [vmem:[#allocation8 + $0x1d4] sm:$0xff]
    %v356 = vld [vmem:[#allocation8 + $0x1dc] sm:$0xf]
    %v357 = vld [vmem:[#allocation8 + $0x1e0] sm:$0xff]
    %v358 = vld [vmem:[#allocation8 + $0x1e8] sm:$0xf]
    %v359 = vld [vmem:[#allocation8 + $0x1ec] sm:$0xff]
    %v360 = vld [vmem:[#allocation8 + $0x1f4] sm:$0xf]
    %v361 = vld [vmem:[#allocation8 + $0x1f8] sm:$0xff]
    %v362 = vld [vmem:[#allocation8 + $0x200] sm:$0xf]
    %v363 = vld [vmem:[#allocation8 + $0x204] sm:$0xff]
    %v364 = vld [vmem:[#allocation8 + $0x20c] sm:$0xf]
    %v365 = vld [vmem:[#allocation8 + $0x210] sm:$0xff]
    %v366 = vld [vmem:[#allocation8 + $0x218] sm:$0xf]
    %v367 = vld [vmem:[#allocation8 + $0x21c] sm:$0xff]
    %v368 = vld [vmem:[#allocation8 + $0x224] sm:$0xf]
    %v369 = vld [vmem:[#allocation8 + $0x228] sm:$0xff]
    %v370 = vld [vmem:[#allocation8 + $0x230] sm:$0xf]
    %v371 = vld [vmem:[#allocation8 + $0x234] sm:$0xff]
    %v372 = vld [vmem:[#allocation8 + $0x23c] sm:$0xf]
    %v373 = vld [vmem:[#allocation8 + $0x240] sm:$0xff]
    %v374 = vld [vmem:[#allocation8 + $0x248] sm:$0xf]
    %v375 = vld [vmem:[#allocation8 + $0x24c] sm:$0xff]
    %v376 = vld [vmem:[#allocation8 + $0x254] sm:$0xf]
    %v377 = vld [vmem:[#allocation8 + $0x258] sm:$0xff]
    %v378 = vld [vmem:[#allocation8 + $0x260] sm:$0xf]
    %v379 = vld [vmem:[#allocation8 + $0x264] sm:$0xff]
    %v380 = vld [vmem:[#allocation8 + $0x26c] sm:$0xf]
    %v381 = vld [vmem:[#allocation8 + $0x270] sm:$0xff]
    %v382 = vld [vmem:[#allocation8 + $0x278] sm:$0xf]
    %v383 = vld [vmem:[#allocation8 + $0x27c] sm:$0xff]
    %v384 = vld [vmem:[#allocation8 + $0x284] sm:$0xf]
    %v385 = vld [vmem:[#allocation8 + $0x288] sm:$0xff]
    %v386 = vld [vmem:[#allocation8 + $0x290] sm:$0xf]
    %v387 = vld [vmem:[#allocation8 + $0x294] sm:$0xff]
    %v388 = vld [vmem:[#allocation8 + $0x29c] sm:$0xf]
    %v389 = vld [vmem:[#allocation8 + $0x2a0] sm:$0xff]
    %v390 = vld [vmem:[#allocation8 + $0x2a8] sm:$0xf]
    %v391 = vld [vmem:[#allocation8 + $0x2ac] sm:$0xff]
    %v392 = vld [vmem:[#allocation8 + $0x2b4] sm:$0xf]
    %v393 = vld [vmem:[#allocation8 + $0x2b8] sm:$0xff]
    %v394 = vld [vmem:[#allocation8 + $0x2c0] sm:$0xf]
    %v395 = vld [vmem:[#allocation8 + $0x2c4] sm:$0xff]
    %v396 = vld [vmem:[#allocation8 + $0x2cc] sm:$0xf]
    %v397 = vld [vmem:[#allocation8 + $0x2d0] sm:$0xff]
    %v398 = vld [vmem:[#allocation8 + $0x2d8] sm:$0xf]
    %v399 = vld [vmem:[#allocation8 + $0x2dc] sm:$0xff]
    %v400 = vld [vmem:[#allocation8 + $0x2e4] sm:$0xf]
    %v401 = vld [vmem:[#allocation8 + $0x2e8] sm:$0xff]
    %v402 = vld [vmem:[#allocation8 + $0x2f0] sm:$0xf]
    %v403 = vld [vmem:[#allocation8 + $0x2f4] sm:$0xff]
    %v404 = vld [vmem:[#allocation8 + $0x2fc] sm:$0xf]
    %v533 = vunpack.c.l.b16 %v277
    %v534 = vunpack.c.h.b16 %v277
    %v535 = vunpack.c.l.b16 %v278
    %v536 = vunpack.c.l.b16 %v279
    %v537 = vunpack.c.h.b16 %v279
    %v538 = vunpack.c.l.b16 %v280
    %v539 = vunpack.c.l.b16 %v281
    %v540 = vunpack.c.h.b16 %v281
    %v541 = vunpack.c.l.b16 %v282
    %v542 = vunpack.c.l.b16 %v283
    %v543 = vunpack.c.h.b16 %v283
    %v544 = vunpack.c.l.b16 %v284
    %v545 = vunpack.c.l.b16 %v285
    %v546 = vunpack.c.h.b16 %v285
    %v547 = vunpack.c.l.b16 %v286
    %v548 = vunpack.c.l.b16 %v287
    %v549 = vunpack.c.h.b16 %v287
    %v550 = vunpack.c.l.b16 %v288
    %v551 = vunpack.c.l.b16 %v289
    %v552 = vunpack.c.h.b16 %v289
    %v553 = vunpack.c.l.b16 %v290
    %v554 = vunpack.c.l.b16 %v291
    %v555 = vunpack.c.h.b16 %v291
    %v556 = vunpack.c.l.b16 %v292
    %v557 = vunpack.c.l.b16 %v293
    %v558 = vunpack.c.h.b16 %v293
    %v559 = vunpack.c.l.b16 %v294
    %v560 = vunpack.c.l.b16 %v295
    %v561 = vunpack.c.h.b16 %v295
    %v562 = vunpack.c.l.b16 %v296
    %v563 = vunpack.c.l.b16 %v297
    %v564 = vunpack.c.h.b16 %v297
    %v565 = vunpack.c.l.b16 %v298
    %v566 = vunpack.c.l.b16 %v299
    %v567 = vunpack.c.h.b16 %v299
    %v568 = vunpack.c.l.b16 %v300
    %v569 = vunpack.c.l.b16 %v301
    %v570 = vunpack.c.h.b16 %v301
    %v571 = vunpack.c.l.b16 %v302
    %v572 = vunpack.c.l.b16 %v303
    %v573 = vunpack.c.h.b16 %v303
    %v574 = vunpack.c.l.b16 %v304
    %v575 = vunpack.c.l.b16 %v305
    %v576 = vunpack.c.h.b16 %v305
    %v577 = vunpack.c.l.b16 %v306
    %v578 = vunpack.c.l.b16 %v307
    %v579 = vunpack.c.h.b16 %v307
    %v580 = vunpack.c.l.b16 %v308
    %v581 = vunpack.c.l.b16 %v309
    %v582 = vunpack.c.h.b16 %v309
    %v583 = vunpack.c.l.b16 %v310
    %v584 = vunpack.c.l.b16 %v311
    %v585 = vunpack.c.h.b16 %v311
    %v586 = vunpack.c.l.b16 %v312
    %v587 = vunpack.c.l.b16 %v313
    %v588 = vunpack.c.h.b16 %v313
    %v589 = vunpack.c.l.b16 %v314
    %v590 = vunpack.c.l.b16 %v315
    %v591 = vunpack.c.h.b16 %v315
    %v592 = vunpack.c.l.b16 %v316
    %v593 = vunpack.c.l.b16 %v317
    %v594 = vunpack.c.h.b16 %v317
    %v595 = vunpack.c.l.b16 %v318
    %v596 = vunpack.c.l.b16 %v319
    %v597 = vunpack.c.h.b16 %v319
    %v598 = vunpack.c.l.b16 %v320
    %v599 = vunpack.c.l.b16 %v321
    %v600 = vunpack.c.h.b16 %v321
    %v601 = vunpack.c.l.b16 %v322
    %v602 = vunpack.c.l.b16 %v323
    %v603 = vunpack.c.h.b16 %v323
    %v604 = vunpack.c.l.b16 %v324
    %v605 = vunpack.c.l.b16 %v325
    %v606 = vunpack.c.h.b16 %v325
    %v607 = vunpack.c.l.b16 %v326
    %v608 = vunpack.c.l.b16 %v327
    %v609 = vunpack.c.h.b16 %v327
    %v610 = vunpack.c.l.b16 %v328
    %v611 = vunpack.c.l.b16 %v329
    %v612 = vunpack.c.h.b16 %v329
    %v613 = vunpack.c.l.b16 %v330
    %v614 = vunpack.c.l.b16 %v331
    %v615 = vunpack.c.h.b16 %v331
    %v616 = vunpack.c.l.b16 %v332
    %v617 = vunpack.c.l.b16 %v333
    %v618 = vunpack.c.h.b16 %v333
    %v619 = vunpack.c.l.b16 %v334
    %v620 = vunpack.c.l.b16 %v335
    %v621 = vunpack.c.h.b16 %v335
    %v622 = vunpack.c.l.b16 %v336
    %v623 = vunpack.c.l.b16 %v337
    %v624 = vunpack.c.h.b16 %v337
    %v625 = vunpack.c.l.b16 %v338
    %v626 = vunpack.c.l.b16 %v339
    %v627 = vunpack.c.h.b16 %v339
    %v628 = vunpack.c.l.b16 %v340
    %v629 = vunpack.c.l.b16 %v341
    %v630 = vunpack.c.h.b16 %v341
    %v631 = vunpack.c.l.b16 %v342
    %v632 = vunpack.c.l.b16 %v343
    %v633 = vunpack.c.h.b16 %v343
    %v634 = vunpack.c.l.b16 %v344
    %v635 = vunpack.c.l.b16 %v345
    %v636 = vunpack.c.h.b16 %v345
    %v637 = vunpack.c.l.b16 %v346
    %v638 = vunpack.c.l.b16 %v347
    %v639 = vunpack.c.h.b16 %v347
    %v640 = vunpack.c.l.b16 %v348
    %v641 = vunpack.c.l.b16 %v349
    %v642 = vunpack.c.h.b16 %v349
    %v643 = vunpack.c.l.b16 %v350
    %v644 = vunpack.c.l.b16 %v351
    %v645 = vunpack.c.h.b16 %v351
    %v646 = vunpack.c.l.b16 %v352
    %v647 = vunpack.c.l.b16 %v353
    %v648 = vunpack.c.h.b16 %v353
    %v649 = vunpack.c.l.b16 %v354
    %v650 = vunpack.c.l.b16 %v355
    %v651 = vunpack.c.h.b16 %v355
    %v652 = vunpack.c.l.b16 %v356
    %v653 = vunpack.c.l.b16 %v357
    %v654 = vunpack.c.h.b16 %v357
    %v655 = vunpack.c.l.b16 %v358
    %v656 = vunpack.c.l.b16 %v359
    %v657 = vunpack.c.h.b16 %v359
    %v658 = vunpack.c.l.b16 %v360
    %v659 = vunpack.c.l.b16 %v361
    %v660 = vunpack.c.h.b16 %v361
    %v661 = vunpack.c.l.b16 %v362
    %v662 = vunpack.c.l.b16 %v363
    %v663 = vunpack.c.h.b16 %v363
    %v664 = vunpack.c.l.b16 %v364
    %v665 = vunpack.c.l.b16 %v365
    %v666 = vunpack.c.h.b16 %v365
    %v667 = vunpack.c.l.b16 %v366
    %v668 = vunpack.c.l.b16 %v367
    %v669 = vunpack.c.h.b16 %v367
    %v670 = vunpack.c.l.b16 %v368
    %v671 = vunpack.c.l.b16 %v369
    %v672 = vunpack.c.h.b16 %v369
    %v673 = vunpack.c.l.b16 %v370
    %v674 = vunpack.c.l.b16 %v371
    %v675 = vunpack.c.h.b16 %v371
    %v676 = vunpack.c.l.b16 %v372
    %v677 = vunpack.c.l.b16 %v373
    %v678 = vunpack.c.h.b16 %v373
    %v679 = vunpack.c.l.b16 %v374
    %v680 = vunpack.c.l.b16 %v375
    %v681 = vunpack.c.h.b16 %v375
    %v682 = vunpack.c.l.b16 %v376
    %v683 = vunpack.c.l.b16 %v377
    %v684 = vunpack.c.h.b16 %v377
    %v685 = vunpack.c.l.b16 %v378
    %v686 = vunpack.c.l.b16 %v379
    %v687 = vunpack.c.h.b16 %v379
    %v688 = vunpack.c.l.b16 %v380
    %v689 = vunpack.c.l.b16 %v381
    %v690 = vunpack.c.h.b16 %v381
    %v691 = vunpack.c.l.b16 %v382
    %v692 = vunpack.c.l.b16 %v383
    %v693 = vunpack.c.h.b16 %v383
    %v694 = vunpack.c.l.b16 %v384
    %v695 = vunpack.c.l.b16 %v385
    %v696 = vunpack.c.h.b16 %v385
    %v697 = vunpack.c.l.b16 %v386
    %v698 = vunpack.c.l.b16 %v387
    %v699 = vunpack.c.h.b16 %v387
    %v700 = vunpack.c.l.b16 %v388
    %v701 = vunpack.c.l.b16 %v389
    %v702 = vunpack.c.h.b16 %v389
    %v703 = vunpack.c.l.b16 %v390
    %v704 = vunpack.c.l.b16 %v391
    %v705 = vunpack.c.h.b16 %v391
    %v706 = vunpack.c.l.b16 %v392
    %v707 = vunpack.c.l.b16 %v393
    %v708 = vunpack.c.h.b16 %v393
    %v709 = vunpack.c.l.b16 %v394
    %v710 = vunpack.c.l.b16 %v395
    %v711 = vunpack.c.h.b16 %v395
    %v712 = vunpack.c.l.b16 %v396
    %v713 = vunpack.c.l.b16 %v397
    %v714 = vunpack.c.h.b16 %v397
    %v715 = vunpack.c.l.b16 %v398
    %v716 = vunpack.c.l.b16 %v399
    %v717 = vunpack.c.h.b16 %v399
    %v718 = vunpack.c.l.b16 %v400
    %v719 = vunpack.c.l.b16 %v401
    %v720 = vunpack.c.h.b16 %v401
    %v721 = vunpack.c.l.b16 %v402
    %v722 = vunpack.c.l.b16 %v403
    %v723 = vunpack.c.h.b16 %v403
    %v724 = vunpack.c.l.b16 %v404
    %v725 = vpack.c.b16 %v536, %v533
    %v726 = vpack.c.b16 %v537, %v534
    %v727 = vpack.c.b16 %v538, %v535
    %v728 = vpack.c.b16 %v542, %v539
    %v729 = vpack.c.b16 %v543, %v540
    %v730 = vpack.c.b16 %v544, %v541
    %v731 = vpack.c.b16 %v548, %v545
    %v732 = vpack.c.b16 %v549, %v546
    %v733 = vpack.c.b16 %v550, %v547
    %v734 = vpack.c.b16 %v554, %v551
    %v735 = vpack.c.b16 %v555, %v552
    %v736 = vpack.c.b16 %v556, %v553
    %v737 = vpack.c.b16 %v560, %v557
    %v738 = vpack.c.b16 %v561, %v558
    %v739 = vpack.c.b16 %v562, %v559
    %v740 = vpack.c.b16 %v566, %v563
    %v741 = vpack.c.b16 %v567, %v564
    %v742 = vpack.c.b16 %v568, %v565
    %v743 = vpack.c.b16 %v572, %v569
    %v744 = vpack.c.b16 %v573, %v570
    %v745 = vpack.c.b16 %v574, %v571
    %v746 = vpack.c.b16 %v578, %v575
    %v747 = vpack.c.b16 %v579, %v576
    %v748 = vpack.c.b16 %v580, %v577
    %v749 = vpack.c.b16 %v584, %v581
    %v750 = vpack.c.b16 %v585, %v582
    %v751 = vpack.c.b16 %v586, %v583
    %v752 = vpack.c.b16 %v590, %v587
    %v753 = vpack.c.b16 %v591, %v588
    %v754 = vpack.c.b16 %v592, %v589
    %v755 = vpack.c.b16 %v596, %v593
    %v756 = vpack.c.b16 %v597, %v594
    %v757 = vpack.c.b16 %v598, %v595
    %v758 = vpack.c.b16 %v602, %v599
    %v759 = vpack.c.b16 %v603, %v600
    %v760 = vpack.c.b16 %v604, %v601
    %v761 = vpack.c.b16 %v608, %v605
    %v762 = vpack.c.b16 %v609, %v606
    %v763 = vpack.c.b16 %v610, %v607
    %v764 = vpack.c.b16 %v614, %v611
    %v765 = vpack.c.b16 %v615, %v612
    %v766 = vpack.c.b16 %v616, %v613
    %v767 = vpack.c.b16 %v620, %v617
    %v768 = vpack.c.b16 %v621, %v618
    %v769 = vpack.c.b16 %v622, %v619
    %v770 = vpack.c.b16 %v626, %v623
    %v771 = vpack.c.b16 %v627, %v624
    %v772 = vpack.c.b16 %v628, %v625
    %v773 = vpack.c.b16 %v632, %v629
    %v774 = vpack.c.b16 %v633, %v630
    %v775 = vpack.c.b16 %v634, %v631
    %v776 = vpack.c.b16 %v638, %v635
    %v777 = vpack.c.b16 %v639, %v636
    %v778 = vpack.c.b16 %v640, %v637
    %v779 = vpack.c.b16 %v644, %v641
    %v780 = vpack.c.b16 %v645, %v642
    %v781 = vpack.c.b16 %v646, %v643
    %v782 = vpack.c.b16 %v650, %v647
    %v783 = vpack.c.b16 %v651, %v648
    %v784 = vpack.c.b16 %v652, %v649
    %v785 = vpack.c.b16 %v656, %v653
    %v786 = vpack.c.b16 %v657, %v654
    %v787 = vpack.c.b16 %v658, %v655
    %v788 = vpack.c.b16 %v662, %v659
    %v789 = vpack.c.b16 %v663, %v660
    %v790 = vpack.c.b16 %v664, %v661
    %v791 = vpack.c.b16 %v668, %v665
    %v792 = vpack.c.b16 %v669, %v666
    %v793 = vpack.c.b16 %v670, %v667
    %v794 = vpack.c.b16 %v674, %v671
    %v795 = vpack.c.b16 %v675, %v672
    %v796 = vpack.c.b16 %v676, %v673
    %v797 = vpack.c.b16 %v680, %v677
    %v798 = vpack.c.b16 %v681, %v678
    %v799 = vpack.c.b16 %v682, %v679
    %v800 = vpack.c.b16 %v686, %v683
    %v801 = vpack.c.b16 %v687, %v684
    %v802 = vpack.c.b16 %v688, %v685
    %v803 = vpack.c.b16 %v692, %v689
    %v804 = vpack.c.b16 %v693, %v690
    %v805 = vpack.c.b16 %v694, %v691
    %v806 = vpack.c.b16 %v698, %v695
    %v807 = vpack.c.b16 %v699, %v696
    %v808 = vpack.c.b16 %v700, %v697
    %v809 = vpack.c.b16 %v704, %v701
    %v810 = vpack.c.b16 %v705, %v702
    %v811 = vpack.c.b16 %v706, %v703
    %v812 = vpack.c.b16 %v710, %v707
    %v813 = vpack.c.b16 %v711, %v708
    %v814 = vpack.c.b16 %v712, %v709
    %v815 = vpack.c.b16 %v716, %v713
    %v816 = vpack.c.b16 %v717, %v714
    %v817 = vpack.c.b16 %v718, %v715
    %v818 = vpack.c.b16 %v722, %v719
    %v819 = vpack.c.b16 %v723, %v720
    %v820 = vpack.c.b16 %v724, %v721
    %917 = vmatpush.bf16.msra.mxu0 %v746
    %918 = vmatpush.bf16.msra.mxu0 %v743
    %919 = vmatpush.bf16.msra.mxu0 %v740
    %920 = vmatpush.bf16.msra.mxu0 %v737
    %921 = vmatpush.bf16.msra.mxu0 %v734
    %922 = vmatpush.bf16.msra.mxu0 %v731
    %923 = vmatpush.bf16.msra.mxu0 %v728
    %924 = vmatpush.bf16.msra.mxu0 %v725
    %925 = vmatmul.bf16.gmra.mxu0 %v273
    %v926 = vpop.f32.mrf.mxu0
    %v927 = vadd.f32 0.0, %v926
    %v928 = vpop.f32.mrf.mxu0
    %v929 = vadd.f32 0.0, %v928
    %930 = vdwg.mxu0
    %931 = vmatpush.bf16.msra.mxu0 %v770
    %932 = vmatpush.bf16.msra.mxu0 %v767
    %933 = vmatpush.bf16.msra.mxu0 %v764
    %934 = vmatpush.bf16.msra.mxu0 %v761
    %935 = vmatpush.bf16.msra.mxu0 %v758
    %936 = vmatpush.bf16.msra.mxu0 %v755
    %937 = vmatpush.bf16.msra.mxu0 %v752
    %938 = vmatpush.bf16.msra.mxu0 %v749
    %939 = vmatmul.bf16.gmra.mxu0 %v274
    %v940 = vpop.f32.mrf.mxu0
    %v941 = vadd.f32 %v927, %v940
    %v942 = vpop.f32.mrf.mxu0
    %v943 = vadd.f32 %v929, %v942
    %944 = vdwg.mxu0
    %945 = vmatpush.bf16.msra.mxu0 %v794
    %946 = vmatpush.bf16.msra.mxu0 %v791
    %947 = vmatpush.bf16.msra.mxu0 %v788
    %948 = vmatpush.bf16.msra.mxu0 %v785
    %949 = vmatpush.bf16.msra.mxu0 %v782
    %950 = vmatpush.bf16.msra.mxu0 %v779
    %951 = vmatpush.bf16.msra.mxu0 %v776
    %952 = vmatpush.bf16.msra.mxu0 %v773
    %953 = vmatmul.bf16.gmra.mxu0 %v275
    %v954 = vpop.f32.mrf.mxu0
    %v955 = vadd.f32 %v941, %v954
    %v956 = vpop.f32.mrf.mxu0
    %v957 = vadd.f32 %v943, %v956
    %958 = vdwg.mxu0
    %959 = vmatpush.bf16.msra.mxu0 %v818
    %960 = vmatpush.bf16.msra.mxu0 %v815
    %961 = vmatpush.bf16.msra.mxu0 %v812
    %962 = vmatpush.bf16.msra.mxu0 %v809
    %963 = vmatpush.bf16.msra.mxu0 %v806
    %964 = vmatpush.bf16.msra.mxu0 %v803
    %965 = vmatpush.bf16.msra.mxu0 %v800
    %966 = vmatpush.bf16.msra.mxu0 %v797
    %967 = vmatmul.bf16.gmra.mxu0 %v276
    %v968 = vpop.f32.mrf.mxu0
    %v969 = vadd.f32 %v955, %v968
    %v970 = vpop.f32.mrf.mxu0
    %v971 = vadd.f32 %v957, %v970
    %972 = vdwg.mxu0
    %973 = vmatpush.bf16.msra.mxu0 %v747
    %974 = vmatpush.bf16.msra.mxu0 %v744
    %975 = vmatpush.bf16.msra.mxu0 %v741
    %976 = vmatpush.bf16.msra.mxu0 %v738
    %977 = vmatpush.bf16.msra.mxu0 %v735
    %978 = vmatpush.bf16.msra.mxu0 %v732
    %979 = vmatpush.bf16.msra.mxu0 %v729
    %980 = vmatpush.bf16.msra.mxu0 %v726
    %981 = vmatmul.bf16.gmra.mxu0 %v273
    %v982 = vpop.f32.mrf.mxu0
    %v983 = vadd.f32 0.0, %v982
    %v984 = vpop.f32.mrf.mxu0
    %v985 = vadd.f32 0.0, %v984
    %986 = vdwg.mxu0
    %987 = vmatpush.bf16.msra.mxu0 %v771
    %988 = vmatpush.bf16.msra.mxu0 %v768
    %989 = vmatpush.bf16.msra.mxu0 %v765
    %990 = vmatpush.bf16.msra.mxu0 %v762
    %991 = vmatpush.bf16.msra.mxu0 %v759
    %992 = vmatpush.bf16.msra.mxu0 %v756
    %993 = vmatpush.bf16.msra.mxu0 %v753
    %994 = vmatpush.bf16.msra.mxu0 %v750
    %995 = vmatmul.bf16.gmra.mxu0 %v274
    %v996 = vpop.f32.mrf.mxu0
    %v997 = vadd.f32 %v983, %v996
    %v998 = vpop.f32.mrf.mxu0
    %v999 = vadd.f32 %v985, %v998
    %1000 = vdwg.mxu0
    %1001 = vmatpush.bf16.msra.mxu0 %v795
    %1002 = vmatpush.bf16.msra.mxu0 %v792
    %1003 = vmatpush.bf16.msra.mxu0 %v789
    %1004 = vmatpush.bf16.msra.mxu0 %v786
    %1005 = vmatpush.bf16.msra.mxu0 %v783
    %1006 = vmatpush.bf16.msra.mxu0 %v780
    %1007 = vmatpush.bf16.msra.mxu0 %v777
    %1008 = vmatpush.bf16.msra.mxu0 %v774
    %1009 = vmatmul.bf16.gmra.mxu0 %v275
    %v1010 = vpop.f32.mrf.mxu0
    %v1011 = vadd.f32 %v997, %v1010
    %v1012 = vpop.f32.mrf.mxu0
    %v1013 = vadd.f32 %v999, %v1012
    %1014 = vdwg.mxu0
    %1015 = vmatpush.bf16.msra.mxu0 %v819
    %1016 = vmatpush.bf16.msra.mxu0 %v816
    %1017 = vmatpush.bf16.msra.mxu0 %v813
    %1018 = vmatpush.bf16.msra.mxu0 %v810
    %1019 = vmatpush.bf16.msra.mxu0 %v807
    %1020 = vmatpush.bf16.msra.mxu0 %v804
    %1021 = vmatpush.bf16.msra.mxu0 %v801
    %1022 = vmatpush.bf16.msra.mxu0 %v798
    %1023 = vmatmul.bf16.gmra.mxu0 %v276
    %v1024 = vpop.f32.mrf.mxu0
    %v1025 = vadd.f32 %v1011, %v1024
    %v1026 = vpop.f32.mrf.mxu0
    %v1027 = vadd.f32 %v1013, %v1026
    %1028 = vdwg.mxu0
    %1029 = vmatpush.bf16.msra.mxu0 %v748
    %1030 = vmatpush.bf16.msra.mxu0 %v745
    %1031 = vmatpush.bf16.msra.mxu0 %v742
    %1032 = vmatpush.bf16.msra.mxu0 %v739
    %1033 = vmatpush.bf16.msra.mxu0 %v736
    %1034 = vmatpush.bf16.msra.mxu0 %v733
    %1035 = vmatpush.bf16.msra.mxu0 %v730
    %1036 = vmatpush.bf16.msra.mxu0 %v727
    %1037 = vmatmul.bf16.gmra.mxu0 %v273
    %v1038 = vpop.f32.mrf.mxu0
    %v1039 = vadd.f32 0.0, %v1038
    %v1040 = vpop.f32.mrf.mxu0
    %v1041 = vadd.f32 0.0, %v1040
    %1042 = vdwg.mxu0
    %1043 = vmatpush.bf16.msra.mxu0 %v772
    %1044 = vmatpush.bf16.msra.mxu0 %v769
    %1045 = vmatpush.bf16.msra.mxu0 %v766
    %1046 = vmatpush.bf16.msra.mxu0 %v763
    %1047 = vmatpush.bf16.msra.mxu0 %v760
    %1048 = vmatpush.bf16.msra.mxu0 %v757
    %1049 = vmatpush.bf16.msra.mxu0 %v754
    %1050 = vmatpush.bf16.msra.mxu0 %v751
    %1051 = vmatmul.bf16.gmra.mxu0 %v274
    %v1052 = vpop.f32.mrf.mxu0
    %v1053 = vadd.f32 %v1039, %v1052
    %v1054 = vpop.f32.mrf.mxu0
    %v1055 = vadd.f32 %v1041, %v1054
    %1056 = vdwg.mxu0
    %1057 = vmatpush.bf16.msra.mxu0 %v796
    %1058 = vmatpush.bf16.msra.mxu0 %v793
    %1059 = vmatpush.bf16.msra.mxu0 %v790
    %1060 = vmatpush.bf16.msra.mxu0 %v787
    %1061 = vmatpush.bf16.msra.mxu0 %v784
    %1062 = vmatpush.bf16.msra.mxu0 %v781
    %1063 = vmatpush.bf16.msra.mxu0 %v778
    %1064 = vmatpush.bf16.msra.mxu0 %v775
    %1065 = vmatmul.bf16.gmra.mxu0 %v275
    %v1066 = vpop.f32.mrf.mxu0
    %v1067 = vadd.f32 %v1053, %v1066
    %v1068 = vpop.f32.mrf.mxu0
    %v1069 = vadd.f32 %v1055, %v1068
    %1070 = vdwg.mxu0
    %1071 = vmatpush.bf16.msra.mxu0 %v820
    %1072 = vmatpush.bf16.msra.mxu0 %v817
    %1073 = vmatpush.bf16.msra.mxu0 %v814
    %1074 = vmatpush.bf16.msra.mxu0 %v811
    %1075 = vmatpush.bf16.msra.mxu0 %v808
    %1076 = vmatpush.bf16.msra.mxu0 %v805
    %1077 = vmatpush.bf16.msra.mxu0 %v802
    %1078 = vmatpush.bf16.msra.mxu0 %v799
    %1079 = vmatmul.bf16.gmra.mxu0 %v276
    %v1080 = vpop.f32.mrf.mxu0
    %v1081 = vadd.f32 %v1067, %v1080
    %v1082 = vpop.f32.mrf.mxu0
    %v1083 = vadd.f32 %v1069, %v1082
    %1084 = vdwg.mxu0
    %v1085 = vpack.c.bf16 %v1025, %v969
    %v1086 = vpack.c.bf16 %v1081, %v1081
    %v1087 = vpack.c.bf16 %v1027, %v971
    %v1088 = vpack.c.bf16 %v1083, %v1083
    %v1089 = vld [vmem:[%s4] sm:$0x7]
    %v1091 = vperm.slane %v1089, 0
    %v1092 = vperm.slane %v1089, 1
    %v1093 = vperm.slane %v1089, 2
    %v1097 = vpack.c.bf16 %v1092, %v1091
    %v1098 = vpack.c.bf16 %v1093, %v1093
    %v1101 = vunpack.c.l.b16 %v1097
    %v1102 = vunpack.c.h.b16 %v1097
    %v1103 = vunpack.c.l.b16 %v1098
    %v1104 = vpack.c.b16 %v1101, %v1101
    %v1105 = vpack.c.b16 %v1102, %v1102
    %v1106 = vpack.c.b16 %v1103, %v1103
    %v1108 = vpack.i.b16 %v1104, %v1104
    %v1110 = vperm.slane %v1108, 0
    %v1112 = vpack.i.b16 %v1105, %v1105
    %v1114 = vperm.slane %v1112, 0
    %v1116 = vpack.i.b16 %v1106, %v1106
    %v1118 = vperm.slane %v1116, 0
    %v1119 = vunpack.c.l.bf16 %v1085
    %v1120 = vunpack.c.h.bf16 %v1085
    %v1121 = vunpack.c.l.bf16 %v1086
    %v1122 = vunpack.c.l.bf16 %v1087
    %v1123 = vunpack.c.h.bf16 %v1087
    %v1124 = vunpack.c.l.bf16 %v1088
    %v1125 = vunpack.c.l.bf16 %v1110
    %v1126 = vunpack.c.l.bf16 %v1114
    %v1127 = vunpack.c.l.bf16 %v1118
    %v1128 = vadd.f32 %v1119, %v1125
    %v1129 = vadd.f32 %v1120, %v1126
    %v1130 = vadd.f32 %v1121, %v1127
    %v1131 = vadd.f32 %v1122, %v1125
    %v1132 = vadd.f32 %v1123, %v1126
    %v1133 = vadd.f32 %v1124, %v1127
    %v1134 = vpack.c.bf16 %v1129, %v1128
    %v1135 = vpack.c.bf16 %v1130, %v1130
    %v1136 = vpack.c.bf16 %v1132, %v1131
    %v1137 = vpack.c.bf16 %v1133, %v1133
    %v1138 = vunpack.c.l.bf16 %v1134
    %v1139 = vunpack.c.h.bf16 %v1134
    %v1140 = vunpack.c.l.bf16 %v1135
    %v1141 = vunpack.c.l.bf16 %v1136
    %v1142 = vunpack.c.h.bf16 %v1136
    %v1143 = vunpack.c.l.bf16 %v1137
    %v1144 = vmax.f32 %v1138, 0.0
    %v1145 = vmax.f32 %v1139, 0.0
    %v1146 = vmax.f32 %v1140, 0.0
    %v1147 = vmax.f32 %v1141, 0.0
    %v1148 = vmax.f32 %v1142, 0.0
    %v1149 = vmax.f32 %v1143, 0.0
    %v1150 = vpack.c.bf16 %v1147, %v1144
    %v1151 = vpack.c.bf16 %v1148, %v1145
    %v1152 = vpack.c.bf16 %v1149, %v1146
    %v1153 = vld [vmem:[#allocation10] sm:$0xf]
    %v1154 = vld [vmem:[#allocation10 + $0x4] sm:$0xf]
    %v1155 = vld [vmem:[#allocation10 + $0x8] sm:$0xf]
    %v1156 = vld [vmem:[#allocation10 + $0xc] sm:$0xf]
    %v1157 = vld [vmem:[#allocation10 + $0x10] sm:$0xf]
    %v1158 = vld [vmem:[#allocation10 + $0x14] sm:$0xf]
    %v1159 = vld [vmem:[#allocation10 + $0x18] sm:$0xf]
    %v1160 = vld [vmem:[#allocation10 + $0x1c] sm:$0xf]
    %v1161 = vld [vmem:[#allocation10 + $0x20] sm:$0xf]
    %v1162 = vld [vmem:[#allocation10 + $0x24] sm:$0xf]
    %v1163 = vld [vmem:[#allocation10 + $0x28] sm:$0xf]
    %v1164 = vld [vmem:[#allocation10 + $0x2c] sm:$0xf]
    %v1165 = vld [vmem:[#allocation10 + $0x30] sm:$0xf]
    %v1166 = vld [vmem:[#allocation10 + $0x34] sm:$0xf]
    %v1167 = vld [vmem:[#allocation10 + $0x38] sm:$0xf]
    %v1168 = vld [vmem:[#allocation10 + $0x3c] sm:$0xf]
    %v1169 = vld [vmem:[#allocation10 + $0x40] sm:$0xf]
    %v1170 = vld [vmem:[#allocation10 + $0x44] sm:$0xf]
    %v1171 = vld [vmem:[#allocation10 + $0x48] sm:$0xf]
    %v1172 = vld [vmem:[#allocation10 + $0x4c] sm:$0xf]
    %v1173 = vld [vmem:[#allocation10 + $0x50] sm:$0xf]
    %v1174 = vld [vmem:[#allocation10 + $0x54] sm:$0xf]
    %v1175 = vld [vmem:[#allocation10 + $0x58] sm:$0xf]
    %v1176 = vld [vmem:[#allocation10 + $0x5c] sm:$0xf]
    %v1177 = vld [vmem:[#allocation10 + $0x60] sm:$0xf]
    %v1178 = vld [vmem:[#allocation10 + $0x64] sm:$0xf]
    %v1179 = vld [vmem:[#allocation10 + $0x68] sm:$0xf]
    %v1180 = vld [vmem:[#allocation10 + $0x6c] sm:$0xf]
    %v1181 = vld [vmem:[#allocation10 + $0x70] sm:$0xf]
    %v1182 = vld [vmem:[#allocation10 + $0x74] sm:$0xf]
    %v1183 = vld [vmem:[#allocation10 + $0x78] sm:$0xf]
    %v1184 = vld [vmem:[#allocation10 + $0x7c] sm:$0xf]
    %v1185 = vld [vmem:[#allocation10 + $0x80] sm:$0xf]
    %v1186 = vld [vmem:[#allocation10 + $0x84] sm:$0xf]
    %v1187 = vld [vmem:[#allocation10 + $0x88] sm:$0xf]
    %v1188 = vld [vmem:[#allocation10 + $0x8c] sm:$0xf]
    %v1189 = vld [vmem:[#allocation10 + $0x90] sm:$0xf]
    %v1190 = vld [vmem:[#allocation10 + $0x94] sm:$0xf]
    %v1191 = vld [vmem:[#allocation10 + $0x98] sm:$0xf]
    %v1192 = vld [vmem:[#allocation10 + $0x9c] sm:$0xf]
    %v1193 = vld [vmem:[#allocation10 + $0xa0] sm:$0xf]
    %v1194 = vld [vmem:[#allocation10 + $0xa4] sm:$0xf]
    %v1195 = vld [vmem:[#allocation10 + $0xa8] sm:$0xf]
    %v1196 = vld [vmem:[#allocation10 + $0xac] sm:$0xf]
    %v1197 = vld [vmem:[#allocation10 + $0xb0] sm:$0xf]
    %v1198 = vld [vmem:[#allocation10 + $0xb4] sm:$0xf]
    %v1199 = vld [vmem:[#allocation10 + $0xb8] sm:$0xf]
    %v1200 = vld [vmem:[#allocation10 + $0xbc] sm:$0xf]
    %v1201 = vld [vmem:[%s6] sm:$0x1]
    %v1203 = vperm.slane %v1201, 0
    %v1253 = vunpack.c.l.b16 %v1153
    %v1254 = vunpack.c.l.b16 %v1154
    %v1255 = vunpack.c.l.b16 %v1155
    %v1256 = vunpack.c.l.b16 %v1156
    %v1257 = vunpack.c.l.b16 %v1157
    %v1258 = vunpack.c.l.b16 %v1158
    %v1259 = vunpack.c.l.b16 %v1159
    %v1260 = vunpack.c.l.b16 %v1160
    %v1261 = vunpack.c.l.b16 %v1161
    %v1262 = vunpack.c.l.b16 %v1162
    %v1263 = vunpack.c.l.b16 %v1163
    %v1264 = vunpack.c.l.b16 %v1164
    %v1265 = vunpack.c.l.b16 %v1165
    %v1266 = vunpack.c.l.b16 %v1166
    %v1267 = vunpack.c.l.b16 %v1167
    %v1268 = vunpack.c.l.b16 %v1168
    %v1269 = vunpack.c.l.b16 %v1169
    %v1270 = vunpack.c.l.b16 %v1170
    %v1271 = vunpack.c.l.b16 %v1171
    %v1272 = vunpack.c.l.b16 %v1172
    %v1273 = vunpack.c.l.b16 %v1173
    %v1274 = vunpack.c.l.b16 %v1174
    %v1275 = vunpack.c.l.b16 %v1175
    %v1276 = vunpack.c.l.b16 %v1176
    %v1277 = vunpack.c.l.b16 %v1177
    %v1278 = vunpack.c.l.b16 %v1178
    %v1279 = vunpack.c.l.b16 %v1179
    %v1280 = vunpack.c.l.b16 %v1180
    %v1281 = vunpack.c.l.b16 %v1181
    %v1282 = vunpack.c.l.b16 %v1182
    %v1283 = vunpack.c.l.b16 %v1183
    %v1284 = vunpack.c.l.b16 %v1184
    %v1285 = vunpack.c.l.b16 %v1185
    %v1286 = vunpack.c.l.b16 %v1186
    %v1287 = vunpack.c.l.b16 %v1187
    %v1288 = vunpack.c.l.b16 %v1188
    %v1289 = vunpack.c.l.b16 %v1189
    %v1290 = vunpack.c.l.b16 %v1190
    %v1291 = vunpack.c.l.b16 %v1191
    %v1292 = vunpack.c.l.b16 %v1192
    %v1293 = vunpack.c.l.b16 %v1193
    %v1294 = vunpack.c.l.b16 %v1194
    %v1295 = vunpack.c.l.b16 %v1195
    %v1296 = vunpack.c.l.b16 %v1196
    %v1297 = vunpack.c.l.b16 %v1197
    %v1298 = vunpack.c.l.b16 %v1198
    %v1299 = vunpack.c.l.b16 %v1199
    %v1300 = vunpack.c.l.b16 %v1200
    %v1301 = vpack.c.b16 %v1254, %v1253
    %v1302 = vpack.c.b16 %v1256, %v1255
    %v1303 = vpack.c.b16 %v1258, %v1257
    %v1304 = vpack.c.b16 %v1260, %v1259
    %v1305 = vpack.c.b16 %v1262, %v1261
    %v1306 = vpack.c.b16 %v1264, %v1263
    %v1307 = vpack.c.b16 %v1266, %v1265
    %v1308 = vpack.c.b16 %v1268, %v1267
    %v1309 = vpack.c.b16 %v1270, %v1269
    %v1310 = vpack.c.b16 %v1272, %v1271
    %v1311 = vpack.c.b16 %v1274, %v1273
    %v1312 = vpack.c.b16 %v1276, %v1275
    %v1313 = vpack.c.b16 %v1278, %v1277
    %v1314 = vpack.c.b16 %v1280, %v1279
    %v1315 = vpack.c.b16 %v1282, %v1281
    %v1316 = vpack.c.b16 %v1284, %v1283
    %v1317 = vpack.c.b16 %v1286, %v1285
    %v1318 = vpack.c.b16 %v1288, %v1287
    %v1319 = vpack.c.b16 %v1290, %v1289
    %v1320 = vpack.c.b16 %v1292, %v1291
    %v1321 = vpack.c.b16 %v1294, %v1293
    %v1322 = vpack.c.b16 %v1296, %v1295
    %v1323 = vpack.c.b16 %v1298, %v1297
    %v1324 = vpack.c.b16 %v1300, %v1299
    %1349 = vmatpush.bf16.msra.mxu0 %v1308
    %1350 = vmatpush.bf16.msra.mxu0 %v1307
    %1351 = vmatpush.bf16.msra.mxu0 %v1306
    %1352 = vmatpush.bf16.msra.mxu0 %v1305
    %1353 = vmatpush.bf16.msra.mxu0 %v1304
    %1354 = vmatpush.bf16.msra.mxu0 %v1303
    %1355 = vmatpush.bf16.msra.mxu0 %v1302
    %1356 = vmatpush.bf16.msra.mxu0 %v1301
    %1357 = vmatmul.bf16.gmra.mxu0 %v1150
    %v1358 = vpop.f32.mrf.mxu0
    %v1359 = vadd.f32 %v1203, %v1358
    %v1360 = vpop.f32.mrf.mxu0
    %v1361 = vadd.f32 %v1203, %v1360
    %1362 = vdwg.mxu0
    %1363 = vmatpush.bf16.msra.mxu0 %v1316
    %1364 = vmatpush.bf16.msra.mxu0 %v1315
    %1365 = vmatpush.bf16.msra.mxu0 %v1314
    %1366 = vmatpush.bf16.msra.mxu0 %v1313
    %1367 = vmatpush.bf16.msra.mxu0 %v1312
    %1368 = vmatpush.bf16.msra.mxu0 %v1311
    %1369 = vmatpush.bf16.msra.mxu0 %v1310
    %1370 = vmatpush.bf16.msra.mxu0 %v1309
    %1371 = vmatmul.bf16.gmra.mxu0 %v1151
    %v1372 = vpop.f32.mrf.mxu0
    %v1373 = vadd.f32 %v1359, %v1372
    %v1374 = vpop.f32.mrf.mxu0
    %v1375 = vadd.f32 %v1361, %v1374
    %1376 = vdwg.mxu0
    %1377 = vmatpush.bf16.msra.mxu0 %v1324
    %1378 = vmatpush.bf16.msra.mxu0 %v1323
    %1379 = vmatpush.bf16.msra.mxu0 %v1322
    %1380 = vmatpush.bf16.msra.mxu0 %v1321
    %1381 = vmatpush.bf16.msra.mxu0 %v1320
    %1382 = vmatpush.bf16.msra.mxu0 %v1319
    %1383 = vmatpush.bf16.msra.mxu0 %v1318
    %1384 = vmatpush.bf16.msra.mxu0 %v1317
    %1385 = vmatmul.bf16.gmra.mxu0 %v1152
    %v1386 = vpop.f32.mrf.mxu0
    %v1387 = vadd.f32 %v1373, %v1386
    %v1388 = vpop.f32.mrf.mxu0
    %v1389 = vadd.f32 %v1375, %v1388
    %1390 = vdwg.mxu0
    %v1391 = vtanh.pop %v1387
    %v1392 = vtanh.pop %v1389
    %v1393 = vpack.c.bf16 %v1391, %v1391
    %v1394 = vpack.c.bf16 %v1392, %v1392
    %1395 = vst [vmem:[#allocation11] sm:$0xf] %v1393
    %1396 = vst [vmem:[#allocation11 + $0x4] sm:$0xf] %v1394
    // Predicated region
    $region50: #{tpu_custom_call.1} parent=1 // pred_check
      _
    $region51: #{tpu_custom_call.1} parent=1 // pred_check_branch
      %1398 = sbr.rel (0) target = $region53
    $region52: #{tpu_custom_call.1} parent=1 // pred_region
      %1400 = vsyncadd [#allocation4], 0
      %s1401 = sshll.u32 [#allocation11], 4
      %s1402 = int_to_ptr.vmem [resolvable:$true] %s1401
      %s1403 = sshll.u32 %s7, 4
      %s1404 = int_to_ptr.hbm [resolvable:$true] %s1403
      %1409 = dma.vmem_to_hbm [thread:$0]  %s1402, 128, %s1404, [#allocation4], 64, 64, 4
    $region53: #{tpu_custom_call.1} parent=1 // pred_fallthru
      _
    // Predicated region
    $region54: #{tpu_custom_call.1} parent=1 // pred_check
      _
    $region55: #{tpu_custom_call.1} parent=1 // pred_check_branch
      %1411 = sbr.rel (0) target = $region57
    $region56: #{tpu_custom_call.1} parent=1 // pred_region
      %1413 = dma.done [#allocation4], 128
    $region57: #{tpu_custom_call.1} parent=1 // pred_fallthru
      _
    %1414 = vsyncpa [#allocation3], 1
    %1415 = vsyncpa [#allocation6], 1
    %1416 = vsyncpa [#allocation9], 1
    %1417 = vsyncpa [#allocation4], 1

</llo_original>
